<compile_context>
chip_gen: v5e
topology: v5e:2x2
jax: 0.10.0
libtpu: 0.0.40
codegen_flags: <defaults>
</compile_context>

<pallas_src>
import jax
import jax.numpy as jnp
from jax.experimental import pallas as pl
from jax.experimental.pallas import tpu as pltpu


# ---------------------------------------------------------------------------
# Kernel 1: gate = sigmoid(conv1x1(swish(conv4x4(pooled))))      (tiny, MXU)
# ---------------------------------------------------------------------------
def _gate_kernel(pooled_ref, w1_ref, w2_ref, gate_ref):
    # pooled_ref : (B, 16*Ci)   pooled feat_small, flattened in (c, kh, kw) order
    # w1_ref     : (16*Ci, Co)  4x4 conv weight, rows in (c, kh, kw) order
    # w2_ref     : (Co, Co)     1x1 conv weight transposed -> [c_in, c_out]
    # gate_ref   : (B, Co)      gate in f32
    h = jnp.dot(pooled_ref[...], w1_ref[...],
                preferred_element_type=jnp.float32)              # (B, Co)
    h = h * jax.nn.sigmoid(h)                                    # Swish
    g = jax.nn.sigmoid(jnp.dot(h, w2_ref[...],
                               preferred_element_type=jnp.float32))
    gate_ref[...] = g


# ---------------------------------------------------------------------------
# Kernel 2: out = feat_big * gate       (lane-dense, HBM-bound broadcast mul)
# ---------------------------------------------------------------------------
def _apply_gate_kernel(fb_ref, gate_ref, out_ref):
    # fb_ref   : (1, Co, T)   spatial tile of flattened feat_big
    # gate_ref : (1, Co, 1)   per-(batch, channel) gate
    # out_ref  : (1, Co, T)
    out_ref[...] = (fb_ref[...] * gate_ref[...]).astype(out_ref.dtype)


def _pick_spatial_tile(hw, co, itemsize, max_lanes=4096, target_bytes=2 << 20):
    """Largest multiple-of-128 divisor of hw within a VMEM-friendly budget."""
    if hw <= max_lanes:
        return hw                      # single tile; full dim is always legal
    cap = min(hw, max_lanes, max(128, target_bytes // max(co * itemsize, 1)))
    t = (cap // 128) * 128
    while t >= 128:
        if hw % t == 0:
            return t
        t -= 128
    return hw                          # fallback: one full-width tile


def se_block(feat_small, feat_big, w1, w2):
    """w1: (Co, Ci, 4, 4) (spectral-normalized), w2: (Co, Co) (spectral-normalized)."""
    B, Ci, Hs, Ws = feat_small.shape
    Bb, Co, Hb, Wb = feat_big.shape
    assert B == Bb
    assert Hs % 4 == 0 and Ws % 4 == 0, "pooling assumes spatial dims divisible by 4"
    # TODO(synk): general AdaptiveAvgPool2d floor/ceil bin edges when H,W % 4 != 0.

    # AdaptiveAvgPool2d(4): linear block-mean done in the wrapper (negligible
    # cost; keeps the Pallas gate kernel a single 128-deep matmul with no
    # in-kernel sublane->lane reshape). Flatten in (c, kh, kw) order.
    bh, bw = Hs // 4, Ws // 4
    pooled = feat_small.reshape(B, Ci, 4, bh, 4, bw).mean(axis=(3, 5))   # (B,Ci,4,4)
    pooled_flat = pooled.reshape(B, Ci * 16).astype(jnp.float32)

    # Pre-reshape weights: 4x4 valid conv collapses to one (16*Ci)-deep matmul.
    w1r = jnp.transpose(w1, (1, 2, 3, 0)).reshape(Ci * 16, Co).astype(jnp.float32)
    w2t = jnp.transpose(w2, (1, 0)).astype(jnp.float32)

    gate = pl.pallas_call(
        _gate_kernel,
        out_shape=jax.ShapeDtypeStruct((B, Co), jnp.float32),
        grid=(1,),
        in_specs=[
            pl.BlockSpec((B, Ci * 16), lambda i: (0, 0)),
            pl.BlockSpec((Ci * 16, Co), lambda i: (0, 0)),
            pl.BlockSpec((Co, Co), lambda i: (0, 0)),
        ],
        out_specs=pl.BlockSpec((B, Co), lambda i: (0, 0)),
    )(pooled_flat, w1r, w2t)

    # Lane-dense, spatially tiled broadcast multiply over (B, Co, Hb*Wb).
    hw = Hb * Wb
    fb_flat = feat_big.reshape(B, Co, hw)
    gate3 = gate.reshape(B, Co, 1)
    t = _pick_spatial_tile(hw, Co, jnp.dtype(feat_big.dtype).itemsize)
    n_tiles = hw // t

    out_flat = pl.pallas_call(
        _apply_gate_kernel,
        out_shape=jax.ShapeDtypeStruct((B, Co, hw), feat_big.dtype),
        grid=(B, n_tiles),
        in_specs=[
            pl.BlockSpec((1, Co, t), lambda b, s: (b, 0, s)),
            pl.BlockSpec((1, Co, 1), lambda b, s: (b, 0, 0)),
        ],
        out_specs=pl.BlockSpec((1, Co, t), lambda b, s: (b, 0, s)),
        compiler_params=pltpu.CompilerParams(
            dimension_semantics=("parallel", "parallel")),
    )(fb_flat, gate3)

    return out_flat.reshape(B, Co, Hb, Wb)


def _spectral_normalize(w):
    # Equivalent of torch spectral_norm at convergence: divide by the largest
    # singular value of the (out_ch, -1)-reshaped weight.
    mat = w.reshape(w.shape[0], -1)
    sigma = jnp.linalg.svd(mat, compute_uv=False)[0]
    return w / sigma


def _reference(feat_small, feat_big, w1, w2):
    B, Ci, Hs, Ws = feat_small.shape
    pooled = feat_small.reshape(B, Ci, 4, Hs // 4, 4, Ws // 4).mean(axis=(3, 5))
    h = jnp.einsum("bcij,ocij->bo", pooled, w1)
    h = h * jax.nn.sigmoid(h)
    g = jax.nn.sigmoid(jnp.einsum("bc,oc->bo", h, w2))
    return feat_big * g[:, :, None, None]


if __name__ == "__main__":
    key = jax.random.PRNGKey(0)
    k1, k2, k3, k4 = jax.random.split(key, 4)

    B, Ci, Co = 2, 8, 4
    Hs = Ws = 16           # feat_small spatial
    Hb = Wb = 128          # feat_big spatial -> 16384 lanes -> 4 spatial tiles

    feat_small = jax.random.normal(k1, (B, Ci, Hs, Ws), jnp.float32)
    feat_big = jax.random.normal(k2, (B, Co, Hb, Wb), jnp.float32)

    # Deterministic parameter init (shapes from nn.Conv2d in __init__), then
    # apply spectral normalization once (synthetic stand-in for torch's SN).
    w1 = jax.random.normal(k3, (Co, Ci, 4, 4), jnp.float32) * 0.1
    w2 = jax.random.normal(k4, (Co, Co, 1, 1), jnp.float32) * 0.1
    w1 = _spectral_normalize(w1)
    w2 = _spectral_normalize(w2)[:, :, 0, 0]          # (Co, Co)

    out = se_block(feat_small, feat_big, w1, w2)
    out = jax.block_until_ready(out)

    ref = _reference(feat_small, feat_big, w1, w2)
    assert out.shape == ref.shape == (B, Co, Hb, Wb)
    assert jnp.allclose(out, ref, atol=1e-5, rtol=1e-5), "mismatch vs reference"

    print("KERNEL_OK")
</pallas_src>

<mosaic_0001>
module attributes {stable_mosaic.version = 11 : i64} {
  func.func @_gate_kernel(%arg0: i32, %arg1: memref<2x128xf32, #tpu.memory_space<vmem>>, %arg2: memref<128x4xf32, #tpu.memory_space<vmem>>, %arg3: memref<4x4xf32, #tpu.memory_space<vmem>>, %arg4: memref<2x4xf32, #tpu.memory_space<vmem>>) attributes {dimension_semantics = [#tpu.dimension_semantics<arbitrary>], iteration_bounds = array<i64: 1>, scalar_prefetch = 0 : i64, scratch_operands = 0 : i64, tpu.core_type = #tpu.core_type<tc>, window_params = [{pipeline_mode = #tpu.pipeline_mode<synchronous>, transform_indices = @transform_0, window_bounds = array<i64: 2, 128>}, {pipeline_mode = #tpu.pipeline_mode<synchronous>, transform_indices = @transform_1, window_bounds = array<i64: 128, 4>}, {pipeline_mode = #tpu.pipeline_mode<synchronous>, transform_indices = @transform_2, window_bounds = array<i64: 4, 4>}, {pipeline_mode = #tpu.pipeline_mode<synchronous>, transform_indices = @transform_3, window_bounds = array<i64: 2, 4>}]} {
    %c0 = arith.constant 0 : index
    %c0_0 = arith.constant 0 : index
    %0 = vector.load %arg1[%c0, %c0_0] : memref<2x128xf32, #tpu.memory_space<vmem>>, vector<2x128xf32>
    %c0_1 = arith.constant 0 : index
    %c0_2 = arith.constant 0 : index
    %1 = vector.load %arg2[%c0_1, %c0_2] : memref<128x4xf32, #tpu.memory_space<vmem>>, vector<128x4xf32>
    %cst = arith.constant dense<0.000000e+00> : vector<2x4xf32>
    %2 = tpu.matmul %0, %1, %cst {dimension_numbers = #tpu.dot_dimension_numbers<[1], [0], [0], [1], [0, 0, 1, 1], [], []>} : vector<2x128xf32>, vector<128x4xf32>, vector<2x4xf32> -> vector<2x4xf32>
    %3 = arith.negf %2 : vector<2x4xf32>
    %4 = math.exp %3 : vector<2x4xf32>
    %cst_3 = arith.constant 1.000000e+00 : f32
    %5 = vector.broadcast %cst_3 : f32 to vector<2x4xf32>
    %6 = arith.addf %5, %4 : vector<2x4xf32>
    %7 = arith.divf %5, %6 : vector<2x4xf32>
    %8 = arith.mulf %2, %7 : vector<2x4xf32>
    %c0_4 = arith.constant 0 : index
    %c0_5 = arith.constant 0 : index
    %9 = vector.load %arg3[%c0_4, %c0_5] : memref<4x4xf32, #tpu.memory_space<vmem>>, vector<4x4xf32>
    %cst_6 = arith.constant dense<0.000000e+00> : vector<2x4xf32>
    %10 = tpu.matmul %8, %9, %cst_6 {dimension_numbers = #tpu.dot_dimension_numbers<[1], [0], [0], [1], [0, 0, 1, 1], [], []>} : vector<2x4xf32>, vector<4x4xf32>, vector<2x4xf32> -> vector<2x4xf32>
    %11 = arith.negf %10 : vector<2x4xf32>
    %12 = math.exp %11 : vector<2x4xf32>
    %cst_7 = arith.constant 1.000000e+00 : f32
    %13 = vector.broadcast %cst_7 : f32 to vector<2x4xf32>
    %14 = arith.addf %13, %12 : vector<2x4xf32>
    %15 = arith.divf %13, %14 : vector<2x4xf32>
    %c0_8 = arith.constant 0 : index
    %c0_9 = arith.constant 0 : index
    %16 = vector.load %arg4[%c0_8, %c0_9] : memref<2x4xf32, #tpu.memory_space<vmem>>, vector<2x4xf32>
    tpu.vector_store %arg4[%c0_8, %c0_9], %15 {strides = array<i32>} : memref<2x4xf32, #tpu.memory_space<vmem>>, vector<2x4xf32>,
    return
  }
  func.func @transform_0(%arg0: i32) -> (i32, i32) {
    %c0_i32 = arith.constant 0 : i32
    %c0_i32_0 = arith.constant 0 : i32
    %c0_i32_1 = arith.constant 0 : i32
    return %c0_i32, %c0_i32_0 : i32, i32
  }
  func.func @transform_1(%arg0: i32) -> (i32, i32) {
    %c0_i32 = arith.constant 0 : i32
    %c0_i32_0 = arith.constant 0 : i32
    %c0_i32_1 = arith.constant 0 : i32
    return %c0_i32, %c0_i32_0 : i32, i32
  }
  func.func @transform_2(%arg0: i32) -> (i32, i32) {
    %c0_i32 = arith.constant 0 : i32
    %c0_i32_0 = arith.constant 0 : i32
    %c0_i32_1 = arith.constant 0 : i32
    return %c0_i32, %c0_i32_0 : i32, i32
  }
  func.func @transform_3(%arg0: i32) -> (i32, i32) {
    %c0_i32 = arith.constant 0 : i32
    %c0_i32_0 = arith.constant 0 : i32
    %c0_i32_1 = arith.constant 0 : i32
    return %c0_i32, %c0_i32_0 : i32, i32
  }
}

</mosaic_0001>

<llo_original>
// kernel: tpu_custom_call.1
$region0: #{tpu_custom_call.1}
  #allocation0 [shape = 'u32[]', space=smem, size = 0x4, offset = 0x4, fixed_abs, tag = 'smem constant byte address 0x4 - core index']
  #allocation1 [shape = 'u32[72,128]{1,0:T(1,128)}', space=vmem, size = 0x9000, scoped, tag = 'internal scratch']
  %s0 = inlined_call_operand.vmem [shape: f32[2,128], index: 0, kind: input, shape index: {}]
  %s1 = inlined_call_operand.vmem [shape: f32[128,4], index: 1, kind: input, shape index: {}]
  %s2 = inlined_call_operand.vmem [shape: f32[4,4], index: 2, kind: input, shape index: {}]
  %s3 = inlined_call_operand.hbm [shape: f32[2,4], index: 3, kind: output, shape index: {}]
  %s4 = sld [smem:[#allocation0]]
  $region22: #{tpu_custom_call.1} parent=0
    _
  %s6 = ssub.s32 1, %s4
  %s7 = scalar_select 0, %s6, %s4
  $region1: #{tpu_custom_call.1} parent=0
    #allocation2 [shape = 'u8[1024]{0}', space=vmem, size = 0x400, scoped, tag = 'output window, operand 0, single buffered']
    #allocation3 [shape = 's32[1]{0}', space=sflag, size = 0x4, scoped, tag = 'scoped memory for tpu_custom_call.1']
    %8 = vsyncpa [#allocation3], 0
    // Predicated region
    $region2: #{tpu_custom_call.1} parent=1 // pred_check
      _
    $region3: #{tpu_custom_call.1} parent=1 // pred_check_branch
      %10 = sbr.rel (0) target = $region5
    $region4: #{tpu_custom_call.1} parent=1 // pred_region
      _
    $region5: #{tpu_custom_call.1} parent=1 // pred_fallthru
      _
    // Predicated region
    $region6: #{tpu_custom_call.1} parent=1 // pred_check
      _
    $region7: #{tpu_custom_call.1} parent=1 // pred_check_branch
      %12 = sbr.rel (0) target = $region9
    $region8: #{tpu_custom_call.1} parent=1 // pred_region
      _
    $region9: #{tpu_custom_call.1} parent=1 // pred_fallthru
      _
    // Predicated region
    $region10: #{tpu_custom_call.1} parent=1 // pred_check
      _
    $region11: #{tpu_custom_call.1} parent=1 // pred_check_branch
      %14 = sbr.rel (0) target = $region13
    $region12: #{tpu_custom_call.1} parent=1 // pred_region
      _
    $region13: #{tpu_custom_call.1} parent=1 // pred_fallthru
      _
    %v15 = vld [vmem:[%s0] sm:$0x3]
    %v16 = vld [vmem:[%s1] sm:$0xff]
    %v17 = vld [vmem:[%s1 + $0x8] sm:$0xff]
    %v18 = vld [vmem:[%s1 + $0x10] sm:$0xff]
    %v19 = vld [vmem:[%s1 + $0x18] sm:$0xff]
    %v20 = vld [vmem:[%s1 + $0x20] sm:$0xff]
    %v21 = vld [vmem:[%s1 + $0x28] sm:$0xff]
    %v22 = vld [vmem:[%s1 + $0x30] sm:$0xff]
    %v23 = vld [vmem:[%s1 + $0x38] sm:$0xff]
    %v24 = vld [vmem:[%s1 + $0x40] sm:$0xff]
    %v25 = vld [vmem:[%s1 + $0x48] sm:$0xff]
    %v26 = vld [vmem:[%s1 + $0x50] sm:$0xff]
    %v27 = vld [vmem:[%s1 + $0x58] sm:$0xff]
    %v28 = vld [vmem:[%s1 + $0x60] sm:$0xff]
    %v29 = vld [vmem:[%s1 + $0x68] sm:$0xff]
    %v30 = vld [vmem:[%s1 + $0x70] sm:$0xff]
    %v31 = vld [vmem:[%s1 + $0x78] sm:$0xff]
    %32 = vmatpush.msra.mxu0 %v31
    %33 = vmatpush.msra.mxu0 %v30
    %34 = vmatpush.msra.mxu0 %v29
    %35 = vmatpush.msra.mxu0 %v28
    %36 = vmatpush.msra.mxu0 %v27
    %37 = vmatpush.msra.mxu0 %v26
    %38 = vmatpush.msra.mxu0 %v25
    %39 = vmatpush.msra.mxu0 %v24
    %40 = vmatpush.msra.mxu0 %v23
    %41 = vmatpush.msra.mxu0 %v22
    %42 = vmatpush.msra.mxu0 %v21
    %43 = vmatpush.msra.mxu0 %v20
    %44 = vmatpush.msra.mxu0 %v19
    %45 = vmatpush.msra.mxu0 %v18
    %46 = vmatpush.msra.mxu0 %v17
    %47 = vmatpush.msra.mxu0 %v16
    %48 = vmatmul.f32.gmra.mxu0 %v15
    %v49 = vpop.f32.mrf.mxu0
    %v50 = vadd.f32 0.0, %v49
    %51 = vdwg.mxu0
    %v52 = vxor.u32 %v50, 2147483648
    %v53 = vmul.f32 %v52, 1.442695
    %v54 = vpow.pop %v53
    %v55 = vadd.f32 %v54, 1.0
    %v56 = vrcp.pop %v55
    %v57 = vmul.f32 %v55, %v56
    %v58 = vsub.f32 1.0, %v57
    %v59 = vmul.f32 %v56, %v58
    %v60 = vadd.f32 %v56, %v59
    %vm61 = vweird.f32 %v55
    %vm62 = vweird.f32 %v56
    %vm63 = vmor %vm61, %vm62
    %v64 = vsel %vm63, %v56, %v60
    %v65 = vand.u32 2147483647, %v55
    %vm66 = vcmp.eq.f32.partialorder %v65, 8.507059e+37
    %v67 = vand.u32 %v55, 2147483648
    %v68 = vor.u32 1.1754944e-38, %v67
    %v69 = vsel %vm66, %v68, %v64
    %v70 = vmul.f32 1.0, %v69
    %v71 = vmul.f32 %v50, %v70
    %v72 = vld [vmem:[%s2] sm:$0xf]
    %vm73 = vcmask 31744
    %v75 = vsel %vm73, %v71, 0
    %vm77 = vcmask 1043456
    %v79 = vsel %vm77, %v72, 0
    %81 = vmatpush.msra.mxu0 0.0
    %82 = vmatpush.msra.mxu0 0.0
    %83 = vmatpush.msra.mxu0 0.0
    %84 = vmatpush.msra.mxu0 0.0
    %85 = vmatpush.msra.mxu0 0.0
    %86 = vmatpush.msra.mxu0 0.0
    %87 = vmatpush.msra.mxu0 0.0
    %88 = vmatpush.msra.mxu0 0.0
    %89 = vmatpush.msra.mxu0 0.0
    %90 = vmatpush.msra.mxu0 0.0
    %91 = vmatpush.msra.mxu0 0.0
    %92 = vmatpush.msra.mxu0 0.0
    %93 = vmatpush.msra.mxu0 0.0
    %94 = vmatpush.msra.mxu0 0.0
    %95 = vmatpush.msra.mxu0 0.0
    %96 = vmatpush.msra.mxu0 %v79
    %97 = vmatmul.f32.gmra.mxu0 %v75
    %v98 = vpop.f32.mrf.mxu0
    %v99 = vadd.f32 0.0, %v98
    %100 = vdwg.mxu0
    %v101 = vxor.u32 %v99, 2147483648
    %v102 = vmul.f32 %v101, 1.442695
    %v103 = vpow.pop %v102
    %v104 = vadd.f32 %v103, 1.0
    %v105 = vrcp.pop %v104
    %v106 = vmul.f32 %v104, %v105
    %v107 = vsub.f32 1.0, %v106
    %v108 = vmul.f32 %v105, %v107
    %v109 = vadd.f32 %v105, %v108
    %vm110 = vweird.f32 %v104
    %vm111 = vweird.f32 %v105
    %vm112 = vmor %vm110, %vm111
    %v113 = vsel %vm112, %v105, %v109
    %v114 = vand.u32 2147483647, %v104
    %vm115 = vcmp.eq.f32.partialorder %v114, 8.507059e+37
    %v116 = vand.u32 %v104, 2147483648
    %v117 = vor.u32 1.1754944e-38, %v116
    %v118 = vsel %vm115, %v117, %v113
    %v119 = vmul.f32 1.0, %v118
    %vm120 = vcmask 25600
    %121 = vst.msk [vmem:[#allocation2] sm:$0x3] %vm120, %v119
    // Predicated region
    $region14: #{tpu_custom_call.1} parent=1 // pred_check
      _
    $region15: #{tpu_custom_call.1} parent=1 // pred_check_branch
      %123 = sbr.rel (0) target = $region17
    $region16: #{tpu_custom_call.1} parent=1 // pred_region
      %125 = vsyncadd [#allocation3], 0
      %s127 = sshll.u32 [#allocation2], 4
      %s128 = int_to_ptr.vmem [resolvable:$true] %s127
      %s129 = sshll.u32 %s3, 4
      %s130 = int_to_ptr.hbm [resolvable:$true] %s129
      %132 = dma.vmem_to_hbm [thread:$0]  %s128, 32, %s130, [#allocation3]
    $region17: #{tpu_custom_call.1} parent=1 // pred_fallthru
      _
    // Predicated region
    $region18: #{tpu_custom_call.1} parent=1 // pred_check
      _
    $region19: #{tpu_custom_call.1} parent=1 // pred_check_branch
      %134 = sbr.rel (0) target = $region21
    $region20: #{tpu_custom_call.1} parent=1 // pred_region
      %136 = dma.done [#allocation3], 32
    $region21: #{tpu_custom_call.1} parent=1 // pred_fallthru
      _
    %137 = vsyncpa [#allocation3], 1

</llo_original>
